<compile_context>
chip_gen: v5e
topology: v5e:2x2
jax: 0.10.0
libtpu: 0.0.40
codegen_flags: <defaults>
</compile_context>

<pallas_src>
import functools

import jax
import jax.numpy as jnp
from jax.experimental import pallas as pl
from jax.experimental.pallas import tpu as pltpu


def _swarm_kernel(q_ref, w_ref, b_ref, mem_ref,
                  ret_ref, att_ref, cons_ref,
                  *, num_agents, batch, inv_sqrt_dim, inv_num_agents,
                  matmul_dtype, mxu_precision):
    mem = mem_ref[...]                          # (M, D) f32
    mem_mm = mem.astype(matmul_dtype)           # MXU operand (bf16 = full-rate on all gens)

    # Per-agent Linear projections (weights differ per agent, so no RHS-reuse win
    # from batching these).  The 1/sqrt(memory_dim) softmax scale is folded into
    # the (B, D)-sized proj instead of the (B, M)-sized scores.
    projs = []
    for a in range(num_agents):                 # small & static: unrolled
        q = q_ref[a].astype(matmul_dtype)       # (B, Q)
        w = w_ref[a].astype(matmul_dtype)       # (Q, D)
        b = b_ref[a]                            # (1, D) f32
        p = jnp.dot(q, w, preferred_element_type=jnp.float32,
                    precision=mxu_precision)    # (B, D) f32
        projs.append((p + b) * inv_sqrt_dim)
    proj_all = jnp.concatenate(projs, axis=0)   # (A*B, D) f32

    # ONE scores matmul for all agents against shared memory.  Contracting the
    # last dims of both operands avoids an in-kernel transpose of `mem`; batching
    # across agents makes any MXU weight (re)load a one-time cost.
    scores = jax.lax.dot_general(
        proj_all.astype(matmul_dtype), mem_mm,
        dimension_numbers=(((1,), (1,)), ((), ())),
        preferred_element_type=jnp.float32,
        precision=mxu_precision)                # (A*B, M) f32

    # Row-wise softmax over memory slots (f32 on all chip generations).
    scores = scores - jnp.max(scores, axis=-1, keepdims=True)
    e = jnp.exp(scores)
    denom = jnp.sum(e, axis=-1, keepdims=True)
    # EUP approximate reciprocal + one Newton-Raphson step: divide moves onto the
    # otherwise idle EUP slot, NR keeps ~1e-6 rel error (holds the 1e-5 tolerance).
    inv = pl.reciprocal(denom, approx=True)
    inv = inv * (2.0 - denom * inv)
    att_all = e * inv                           # (A*B, M)

    # ONE retrieval matmul for all agents.
    retrieved_all = jnp.dot(att_all.astype(matmul_dtype), mem_mm,
                            preferred_element_type=jnp.float32,
                            precision=mxu_precision)        # (A*B, D) f32

    att_ref[...] = att_all.astype(att_ref.dtype)
    ret_ref[...] = retrieved_all.astype(ret_ref.dtype)

    # Consensus = mean over agents (static sublane slices of the flat slab).
    consensus = retrieved_all[0:batch]
    for a in range(1, num_agents):
        consensus = consensus + retrieved_all[a * batch:(a + 1) * batch]
    cons_ref[...] = (consensus * inv_num_agents).astype(cons_ref.dtype)


@functools.partial(jax.jit, static_argnames=("matmul_dtype",))
def shared_swarm_memory_forward(queries, weights, biases, shared_memory,
                                *, matmul_dtype=jnp.float32):
    """queries: (A, B, Q); weights: (A, Q, D); biases: (A, 1, D); shared_memory: (M, D).

    Returns stacked (retrievals (A,B,D), consensus (B,D), attention (A,B,M)) matching
    the PyTorch module's forward (inference path; update=False); index [i] of the
    stacked arrays equals the module's i-th list element.

    matmul_dtype=jnp.bfloat16 is the recommended fast path on v5e, v6e and v7x
    (MXU is bf16-native on all of them); accumulation and softmax stay f32.
    The default f32 path requests Precision.HIGHEST for the tight test tolerance.
    """
    A, B, Q = queries.shape
    M, D = shared_memory.shape

    kernel = functools.partial(
        _swarm_kernel,
        num_agents=A,
        batch=B,
        inv_sqrt_dim=1.0 / float(D) ** 0.5,
        inv_num_agents=1.0 / float(A),
        matmul_dtype=matmul_dtype,
        mxu_precision=(jax.lax.Precision.HIGHEST if matmul_dtype == jnp.float32
                       else jax.lax.Precision.DEFAULT),
    )

    # Single gridless invocation: a few KiB of operands, everything resident in VMEM.
    vmem = pl.BlockSpec(memory_space=pltpu.MemorySpace.VMEM)
    ret_flat, att_flat, consensus = pl.pallas_call(
        kernel,
        out_shape=(
            jax.ShapeDtypeStruct((A * B, D), jnp.float32),
            jax.ShapeDtypeStruct((A * B, M), jnp.float32),
            jax.ShapeDtypeStruct((B, D), jnp.float32),
        ),
        in_specs=[vmem, vmem, vmem, vmem],
        out_specs=(vmem, vmem, vmem),
    )(queries.astype(jnp.float32), weights.astype(jnp.float32),
      biases.astype(jnp.float32), shared_memory.astype(jnp.float32))

    # Row-major reshapes of the flat slabs are free (fused/bitcast) under jit.
    retrievals = ret_flat.reshape(A, B, D)
    attention = att_flat.reshape(A, B, M)
    # TODO(synk): training-mode memory update (update=True shared_memory EMA) is a
    # stateful parameter mutation; not implemented in this inference kernel.
    return retrievals, consensus, attention


def _reference(queries, weights, biases, shared_memory):
    """Pure-JAX mirror of the PyTorch forward (stacked outputs)."""
    D = shared_memory.shape[1]
    proj = jnp.einsum("abq,aqd->abd", queries, weights) + biases           # (A, B, D)
    scores = jnp.einsum("abd,md->abm", proj, shared_memory) / D ** 0.5    # (A, B, M)
    att = jax.nn.softmax(scores, axis=-1)
    rets = jnp.einsum("abm,md->abd", att, shared_memory)
    consensus = jnp.mean(rets, axis=0)
    return rets, consensus, att


if __name__ == "__main__":
    num_agents = 4
    batch = 2
    query_dim = 32
    memory_size = 16
    memory_dim = 32

    key = jax.random.PRNGKey(0)
    k_q, k_w, k_b, k_m = jax.random.split(key, 4)

    # Deterministic synthetic parameters (mirrors the module's __init__ shapes).
    queries = jax.random.normal(k_q, (num_agents, batch, query_dim), jnp.float32)
    weights = jax.random.normal(k_w, (num_agents, query_dim, memory_dim), jnp.float32) \
        * (1.0 / query_dim ** 0.5)
    biases = jax.random.normal(k_b, (num_agents, 1, memory_dim), jnp.float32) \
        * (1.0 / query_dim ** 0.5)
    shared_memory = jax.random.normal(k_m, (memory_size, memory_dim), jnp.float32) \
        / memory_dim ** 0.5

    rets_ref, cons_ref, atts_ref = _reference(queries, weights, biases, shared_memory)

    # f32 MXU path (exact; HIGHEST-precision matmuls + NR-corrected reciprocal).
    rets, consensus, atts = shared_swarm_memory_forward(
        queries, weights, biases, shared_memory, matmul_dtype=jnp.float32)
    jax.block_until_ready(consensus)
    assert jnp.allclose(rets, rets_ref, atol=1e-5, rtol=1e-5)
    assert jnp.allclose(atts, atts_ref, atol=1e-5, rtol=1e-5)
    assert jnp.allclose(consensus, cons_ref, atol=1e-5, rtol=1e-5)

    # bf16 MXU path (recommended on v5e/v6e/v7x); looser tolerance from bf16 inputs.
    rets_bf, consensus_bf, atts_bf = shared_swarm_memory_forward(
        queries, weights, biases, shared_memory, matmul_dtype=jnp.bfloat16)
    jax.block_until_ready(consensus_bf)
    assert jnp.allclose(rets_bf, rets_ref, atol=2e-2, rtol=2e-2)
    assert jnp.allclose(atts_bf, atts_ref, atol=2e-2, rtol=2e-2)
    assert jnp.allclose(consensus_bf, cons_ref, atol=2e-2, rtol=2e-2)

    print("KERNEL_OK")
</pallas_src>

<mosaic_0001>
module attributes {stable_mosaic.version = 11 : i64} {
  func.func @_swarm_kernel(%arg0: memref<4x2x32xf32, #tpu.memory_space<vmem>>, %arg1: memref<4x32x32xf32, #tpu.memory_space<vmem>>, %arg2: memref<4x1x32xf32, #tpu.memory_space<vmem>>, %arg3: memref<16x32xf32, #tpu.memory_space<vmem>>, %arg4: memref<8x32xf32, #tpu.memory_space<vmem>>, %arg5: memref<8x16xf32, #tpu.memory_space<vmem>>, %arg6: memref<2x32xf32, #tpu.memory_space<vmem>>) attributes {dimension_semantics = [], scalar_prefetch = 0 : i64, scratch_operands = 0 : i64, tpu.core_type = #tpu.core_type<tc>} {
    %c0 = arith.constant 0 : index
    %c0_0 = arith.constant 0 : index
    %0 = vector.load %arg3[%c0, %c0_0] : memref<16x32xf32, #tpu.memory_space<vmem>>, vector<16x32xf32>
    %c0_1 = arith.constant 0 : index
    %c0_2 = arith.constant 0 : index
    %c0_3 = arith.constant 0 : index
    %1 = vector.load %arg0[%c0_1, %c0_2, %c0_3] : memref<4x2x32xf32, #tpu.memory_space<vmem>>, vector<1x2x32xf32>
    %2 = vector.shape_cast %1 : vector<1x2x32xf32> to vector<2x32xf32>
    %c0_4 = arith.constant 0 : index
    %c0_5 = arith.constant 0 : index
    %c0_6 = arith.constant 0 : index
    %3 = vector.load %arg1[%c0_4, %c0_5, %c0_6] : memref<4x32x32xf32, #tpu.memory_space<vmem>>, vector<1x32x32xf32>
    %4 = vector.shape_cast %3 : vector<1x32x32xf32> to vector<32x32xf32>
    %c0_7 = arith.constant 0 : index
    %c0_8 = arith.constant 0 : index
    %c0_9 = arith.constant 0 : index
    %5 = vector.load %arg2[%c0_7, %c0_8, %c0_9] : memref<4x1x32xf32, #tpu.memory_space<vmem>>, vector<1x1x32xf32>
    %6 = vector.shape_cast %5 : vector<1x1x32xf32> to vector<1x32xf32>
    %cst = arith.constant dense<0.000000e+00> : vector<2x32xf32>
    %7 = tpu.matmul %2, %4, %cst {dimension_numbers = #tpu.dot_dimension_numbers<[1], [0], [0], [1], [0, 0, 1, 1], [], []>, precision = #tpu.contract_precision<fp32>} : vector<2x32xf32>, vector<32x32xf32>, vector<2x32xf32> -> vector<2x32xf32>
    %8 = vector.broadcast %6 : vector<1x32xf32> to vector<2x32xf32>
    %9 = arith.addf %7, %8 : vector<2x32xf32>
    %cst_10 = arith.constant 0.176776692 : f32
    %10 = vector.broadcast %cst_10 : f32 to vector<2x32xf32>
    %11 = arith.mulf %9, %10 : vector<2x32xf32>
    %c1 = arith.constant 1 : index
    %c0_11 = arith.constant 0 : index
    %c0_12 = arith.constant 0 : index
    %12 = vector.load %arg0[%c1, %c0_11, %c0_12] : memref<4x2x32xf32, #tpu.memory_space<vmem>>, vector<1x2x32xf32>
    %13 = vector.shape_cast %12 : vector<1x2x32xf32> to vector<2x32xf32>
    %c1_13 = arith.constant 1 : index
    %c0_14 = arith.constant 0 : index
    %c0_15 = arith.constant 0 : index
    %14 = vector.load %arg1[%c1_13, %c0_14, %c0_15] : memref<4x32x32xf32, #tpu.memory_space<vmem>>, vector<1x32x32xf32>
    %15 = vector.shape_cast %14 : vector<1x32x32xf32> to vector<32x32xf32>
    %c1_16 = arith.constant 1 : index
    %c0_17 = arith.constant 0 : index
    %c0_18 = arith.constant 0 : index
    %16 = vector.load %arg2[%c1_16, %c0_17, %c0_18] : memref<4x1x32xf32, #tpu.memory_space<vmem>>, vector<1x1x32xf32>
    %17 = vector.shape_cast %16 : vector<1x1x32xf32> to vector<1x32xf32>
    %cst_19 = arith.constant dense<0.000000e+00> : vector<2x32xf32>
    %18 = tpu.matmul %13, %15, %cst_19 {dimension_numbers = #tpu.dot_dimension_numbers<[1], [0], [0], [1], [0, 0, 1, 1], [], []>, precision = #tpu.contract_precision<fp32>} : vector<2x32xf32>, vector<32x32xf32>, vector<2x32xf32> -> vector<2x32xf32>
    %19 = vector.broadcast %17 : vector<1x32xf32> to vector<2x32xf32>
    %20 = arith.addf %18, %19 : vector<2x32xf32>
    %cst_20 = arith.constant 0.176776692 : f32
    %21 = vector.broadcast %cst_20 : f32 to vector<2x32xf32>
    %22 = arith.mulf %20, %21 : vector<2x32xf32>
    %c2 = arith.constant 2 : index
    %c0_21 = arith.constant 0 : index
    %c0_22 = arith.constant 0 : index
    %23 = vector.load %arg0[%c2, %c0_21, %c0_22] : memref<4x2x32xf32, #tpu.memory_space<vmem>>, vector<1x2x32xf32>
    %24 = vector.shape_cast %23 : vector<1x2x32xf32> to vector<2x32xf32>
    %c2_23 = arith.constant 2 : index
    %c0_24 = arith.constant 0 : index
    %c0_25 = arith.constant 0 : index
    %25 = vector.load %arg1[%c2_23, %c0_24, %c0_25] : memref<4x32x32xf32, #tpu.memory_space<vmem>>, vector<1x32x32xf32>
    %26 = vector.shape_cast %25 : vector<1x32x32xf32> to vector<32x32xf32>
    %c2_26 = arith.constant 2 : index
    %c0_27 = arith.constant 0 : index
    %c0_28 = arith.constant 0 : index
    %27 = vector.load %arg2[%c2_26, %c0_27, %c0_28] : memref<4x1x32xf32, #tpu.memory_space<vmem>>, vector<1x1x32xf32>
    %28 = vector.shape_cast %27 : vector<1x1x32xf32> to vector<1x32xf32>
    %cst_29 = arith.constant dense<0.000000e+00> : vector<2x32xf32>
    %29 = tpu.matmul %24, %26, %cst_29 {dimension_numbers = #tpu.dot_dimension_numbers<[1], [0], [0], [1], [0, 0, 1, 1], [], []>, precision = #tpu.contract_precision<fp32>} : vector<2x32xf32>, vector<32x32xf32>, vector<2x32xf32> -> vector<2x32xf32>
    %30 = vector.broadcast %28 : vector<1x32xf32> to vector<2x32xf32>
    %31 = arith.addf %29, %30 : vector<2x32xf32>
    %cst_30 = arith.constant 0.176776692 : f32
    %32 = vector.broadcast %cst_30 : f32 to vector<2x32xf32>
    %33 = arith.mulf %31, %32 : vector<2x32xf32>
    %c3 = arith.constant 3 : index
    %c0_31 = arith.constant 0 : index
    %c0_32 = arith.constant 0 : index
    %34 = vector.load %arg0[%c3, %c0_31, %c0_32] : memref<4x2x32xf32, #tpu.memory_space<vmem>>, vector<1x2x32xf32>
    %35 = vector.shape_cast %34 : vector<1x2x32xf32> to vector<2x32xf32>
    %c3_33 = arith.constant 3 : index
    %c0_34 = arith.constant 0 : index
    %c0_35 = arith.constant 0 : index
    %36 = vector.load %arg1[%c3_33, %c0_34, %c0_35] : memref<4x32x32xf32, #tpu.memory_space<vmem>>, vector<1x32x32xf32>
    %37 = vector.shape_cast %36 : vector<1x32x32xf32> to vector<32x32xf32>
    %c3_36 = arith.constant 3 : index
    %c0_37 = arith.constant 0 : index
    %c0_38 = arith.constant 0 : index
    %38 = vector.load %arg2[%c3_36, %c0_37, %c0_38] : memref<4x1x32xf32, #tpu.memory_space<vmem>>, vector<1x1x32xf32>
    %39 = vector.shape_cast %38 : vector<1x1x32xf32> to vector<1x32xf32>
    %cst_39 = arith.constant dense<0.000000e+00> : vector<2x32xf32>
    %40 = tpu.matmul %35, %37, %cst_39 {dimension_numbers = #tpu.dot_dimension_numbers<[1], [0], [0], [1], [0, 0, 1, 1], [], []>, precision = #tpu.contract_precision<fp32>} : vector<2x32xf32>, vector<32x32xf32>, vector<2x32xf32> -> vector<2x32xf32>
    %41 = vector.broadcast %39 : vector<1x32xf32> to vector<2x32xf32>
    %42 = arith.addf %40, %41 : vector<2x32xf32>
    %cst_40 = arith.constant 0.176776692 : f32
    %43 = vector.broadcast %cst_40 : f32 to vector<2x32xf32>
    %44 = arith.mulf %42, %43 : vector<2x32xf32>
    %45 = tpu.concatenate %11, %22, %33, %44 in 0 : vector<2x32xf32>, vector<2x32xf32>, vector<2x32xf32>, vector<2x32xf32> -> vector<8x32xf32>
    %cst_41 = arith.constant dense<0.000000e+00> : vector<8x16xf32>
    %46 = tpu.matmul %45, %0, %cst_41 {dimension_numbers = #tpu.dot_dimension_numbers<[1], [1], [0], [0], [0, 0, 1, 0], [], []>, precision = #tpu.contract_precision<fp32>} : vector<8x32xf32>, vector<16x32xf32>, vector<8x16xf32> -> vector<8x16xf32>
    %cst_42 = arith.constant dense<0xFF800000> : vector<8xf32>
    %47 = vector.multi_reduction <maximumf>, %46, %cst_42 [1] : vector<8x16xf32> to vector<8xf32>
    %48 = vector.shape_cast %47 : vector<8xf32> to vector<8x1xf32>
    %49 = vector.broadcast %48 : vector<8x1xf32> to vector<8x16xf32>
    %50 = arith.subf %46, %49 : vector<8x16xf32>
    %51 = math.exp %50 : vector<8x16xf32>
    %cst_43 = arith.constant dense<0.000000e+00> : vector<8xf32>
    %52 = vector.multi_reduction <add>, %51, %cst_43 [1] : vector<8x16xf32> to vector<8xf32>
    %53 = vector.shape_cast %52 : vector<8xf32> to vector<8x1xf32>
    %54 = tpu.reciprocal %53 {approx = true} : vector<8x1xf32> -> vector<8x1xf32>
    %55 = arith.mulf %53, %54 : vector<8x1xf32>
    %cst_44 = arith.constant 2.000000e+00 : f32
    %56 = vector.broadcast %cst_44 : f32 to vector<8x1xf32>
    %57 = arith.subf %56, %55 : vector<8x1xf32>
    %58 = arith.mulf %54, %57 : vector<8x1xf32>
    %59 = vector.broadcast %58 : vector<8x1xf32> to vector<8x16xf32>
    %60 = arith.mulf %51, %59 : vector<8x16xf32>
    %cst_45 = arith.constant dense<0.000000e+00> : vector<8x32xf32>
    %61 = tpu.matmul %60, %0, %cst_45 {dimension_numbers = #tpu.dot_dimension_numbers<[1], [0], [0], [1], [0, 0, 1, 1], [], []>, precision = #tpu.contract_precision<fp32>} : vector<8x16xf32>, vector<16x32xf32>, vector<8x32xf32> -> vector<8x32xf32>
    %c0_46 = arith.constant 0 : index
    %c0_47 = arith.constant 0 : index
    %62 = vector.load %arg5[%c0_46, %c0_47] : memref<8x16xf32, #tpu.memory_space<vmem>>, vector<8x16xf32>
    tpu.vector_store %arg5[%c0_46, %c0_47], %60 {strides = array<i32>} : memref<8x16xf32, #tpu.memory_space<vmem>>, vector<8x16xf32>,
    %c0_48 = arith.constant 0 : index
    %c0_49 = arith.constant 0 : index
    %63 = vector.load %arg4[%c0_48, %c0_49] : memref<8x32xf32, #tpu.memory_space<vmem>>, vector<8x32xf32>
    tpu.vector_store %arg4[%c0_48, %c0_49], %61 {strides = array<i32>} : memref<8x32xf32, #tpu.memory_space<vmem>>, vector<8x32xf32>,
    %64 = vector.extract_strided_slice %61 {offsets = [0, 0], sizes = [2, 32], strides = [1, 1]} : vector<8x32xf32> to vector<2x32xf32>
    %65 = vector.extract_strided_slice %61 {offsets = [2, 0], sizes = [2, 32], strides = [1, 1]} : vector<8x32xf32> to vector<2x32xf32>
    %66 = arith.addf %64, %65 : vector<2x32xf32>
    %67 = vector.extract_strided_slice %61 {offsets = [4, 0], sizes = [2, 32], strides = [1, 1]} : vector<8x32xf32> to vector<2x32xf32>
    %68 = arith.addf %66, %67 : vector<2x32xf32>
    %69 = vector.extract_strided_slice %61 {offsets = [6, 0], sizes = [2, 32], strides = [1, 1]} : vector<8x32xf32> to vector<2x32xf32>
    %70 = arith.addf %68, %69 : vector<2x32xf32>
    %cst_50 = arith.constant 2.500000e-01 : f32
    %71 = vector.broadcast %cst_50 : f32 to vector<2x32xf32>
    %72 = arith.mulf %70, %71 : vector<2x32xf32>
    %c0_51 = arith.constant 0 : index
    %c0_52 = arith.constant 0 : index
    %73 = vector.load %arg6[%c0_51, %c0_52] : memref<2x32xf32, #tpu.memory_space<vmem>>, vector<2x32xf32>
    tpu.vector_store %arg6[%c0_51, %c0_52], %72 {strides = array<i32>} : memref<2x32xf32, #tpu.memory_space<vmem>>, vector<2x32xf32>,
    return
  }
}

</mosaic_0001>

<llo_original>
// kernel: shared_swarm_memory_forward.1
$region0: #{shared_swarm_memory_forward.1}
  #allocation0 [shape = 'u32[]', space=smem, size = 0x4, offset = 0x4, fixed_abs, tag = 'smem constant byte address 0x4 - core index']
  #allocation1 [shape = 'u32[72,128]{1,0:T(1,128)}', space=vmem, size = 0x9000, scoped, tag = 'internal scratch']
  %s0 = inlined_call_operand.hbm [shape: f32[4,2,32], index: 0, kind: input, shape index: {}]
  %s1 = inlined_call_operand.hbm [shape: f32[4,32,32], index: 1, kind: input, shape index: {}]
  %s2 = inlined_call_operand.hbm [shape: f32[4,1,32], index: 2, kind: input, shape index: {}]
  %s3 = inlined_call_operand.hbm [shape: f32[16,32], index: 3, kind: input, shape index: {}]
  %s4 = inlined_call_operand.hbm [shape: f32[8,32], index: 4, kind: output, shape index: {0}]
  %s5 = inlined_call_operand.hbm [shape: f32[8,16], index: 5, kind: output, shape index: {1}]
  %s6 = inlined_call_operand.hbm [shape: f32[2,32], index: 6, kind: output, shape index: {2}]
  %7 = xla_tuple %s4, %s5, %s6
  %s8 = sld [smem:[#allocation0]]
  $region58: #{shared_swarm_memory_forward.1} parent=0
    _
  %s10 = ssub.s32 1, %s8
  %s11 = scalar_select 0, %s10, %s8
  $region1: #{shared_swarm_memory_forward.1} parent=0
    #allocation2 [shape = 'u8[4096]{0}', space=vmem, size = 0x1000, scoped, tag = 'input window, operand 0, single buffered']
    #allocation3 [shape = 's32[1]{0}', space=sflag, size = 0x4, scoped, tag = 'scoped memory for shared_swarm_memory_forward.1']
    #allocation4 [shape = 's32[1]{0}', space=sflag, size = 0x4, scoped, tag = 'scoped memory for shared_swarm_memory_forward.1']
    #allocation5 [shape = 'u8[65536]{0}', space=vmem, size = 0x10000, scoped, tag = 'input window, operand 1, single buffered']
    #allocation6 [shape = 's32[1]{0}', space=sflag, size = 0x4, scoped, tag = 'scoped memory for shared_swarm_memory_forward.1']
    #allocation7 [shape = 'u8[2048]{0}', space=vmem, size = 0x800, scoped, tag = 'input window, operand 2, single buffered']
    #allocation8 [shape = 'u8[8192]{0}', space=vmem, size = 0x2000, scoped, tag = 'input window, operand 3, single buffered']
    #allocation9 [shape = 's32[1]{0}', space=sflag, size = 0x4, scoped, tag = 'scoped memory for shared_swarm_memory_forward.1']
    #allocation10 [shape = 'u8[4096]{0}', space=vmem, size = 0x1000, scoped, tag = 'output window, operand 0, single buffered']
    #allocation11 [shape = 'u8[4096]{0}', space=vmem, size = 0x1000, scoped, tag = 'output window, operand 1, single buffered']
    #allocation12 [shape = 's32[1]{0}', space=sflag, size = 0x4, scoped, tag = 'scoped memory for shared_swarm_memory_forward.1']
    #allocation13 [shape = 'u8[1024]{0}', space=vmem, size = 0x400, scoped, tag = 'output window, operand 2, single buffered']
    %12 = vsyncpa [#allocation3], 0
    %13 = vsyncpa [#allocation6], 0
    %14 = vsyncpa [#allocation9], 0
    %15 = vsyncpa [#allocation4], 0
    %16 = vsyncpa [#allocation12], 0
    // Predicated region
    $region2: #{shared_swarm_memory_forward.1} parent=1 // pred_check
      _
    $region3: #{shared_swarm_memory_forward.1} parent=1 // pred_check_branch
      %18 = sbr.rel (0) target = $region5
    $region4: #{shared_swarm_memory_forward.1} parent=1 // pred_region
      %20 = vsyncadd [#allocation3], 0
      %s21 = sshll.u32 %s0, 4
      %s22 = int_to_ptr.hbm [resolvable:$true] %s21
      %s23 = sshll.u32 [#allocation2], 4
      %s24 = int_to_ptr.vmem [resolvable:$true] %s23
      %29 = dma.hbm_to_vmem [thread:$0]  %s22, 128, %s24, [#allocation3], 32, 32, 2
    $region5: #{shared_swarm_memory_forward.1} parent=1 // pred_fallthru
      _
    // Predicated region
    $region6: #{shared_swarm_memory_forward.1} parent=1 // pred_check
      _
    $region7: #{shared_swarm_memory_forward.1} parent=1 // pred_check_branch
      %31 = sbr.rel (0) target = $region9
    $region8: #{shared_swarm_memory_forward.1} parent=1 // pred_region
      %33 = vsyncadd [#allocation6], 0
      %s34 = sshll.u32 %s1, 4
      %s35 = int_to_ptr.hbm [resolvable:$true] %s34
      %s36 = sshll.u32 [#allocation5], 4
      %s37 = int_to_ptr.vmem [resolvable:$true] %s36
      %42 = dma.hbm_to_vmem [thread:$0]  %s35, 2048, %s37, [#allocation6], 128, 128, 8
    $region9: #{shared_swarm_memory_forward.1} parent=1 // pred_fallthru
      _
    // Predicated region
    $region10: #{shared_swarm_memory_forward.1} parent=1 // pred_check
      _
    $region11: #{shared_swarm_memory_forward.1} parent=1 // pred_check_branch
      %44 = sbr.rel (0) target = $region13
    $region12: #{shared_swarm_memory_forward.1} parent=1 // pred_region
      %46 = vsyncadd [#allocation6], 0
      %s47 = sshll.u32 %s2, 4
      %s48 = int_to_ptr.hbm [resolvable:$true] %s47
      %s49 = sshll.u32 [#allocation7], 4
      %s50 = int_to_ptr.vmem [resolvable:$true] %s49
      %55 = dma.hbm_to_vmem [thread:$0]  %s48, 64, %s50, [#allocation6], 16, 16, 1
    $region13: #{shared_swarm_memory_forward.1} parent=1 // pred_fallthru
      _
    // Predicated region
    $region14: #{shared_swarm_memory_forward.1} parent=1 // pred_check
      _
    $region15: #{shared_swarm_memory_forward.1} parent=1 // pred_check_branch
      %57 = sbr.rel (0) target = $region17
    $region16: #{shared_swarm_memory_forward.1} parent=1 // pred_region
      %59 = vsyncadd [#allocation9], 0
      %s60 = sshll.u32 %s3, 4
      %s61 = int_to_ptr.hbm [resolvable:$true] %s60
      %s62 = sshll.u32 [#allocation8], 4
      %s63 = int_to_ptr.vmem [resolvable:$true] %s62
      %68 = dma.hbm_to_vmem [thread:$0]  %s61, 256, %s63, [#allocation9], 128, 128, 8
    $region17: #{shared_swarm_memory_forward.1} parent=1 // pred_fallthru
      _
    // Predicated region
    $region18: #{shared_swarm_memory_forward.1} parent=1 // pred_check
      _
    $region19: #{shared_swarm_memory_forward.1} parent=1 // pred_check_branch
      %70 = sbr.rel (0) target = $region21
    $region20: #{shared_swarm_memory_forward.1} parent=1 // pred_region
      %72 = dma.done [#allocation3], 128
    $region21: #{shared_swarm_memory_forward.1} parent=1 // pred_fallthru
      _
    // Predicated region
    $region22: #{shared_swarm_memory_forward.1} parent=1 // pred_check
      _
    $region23: #{shared_swarm_memory_forward.1} parent=1 // pred_check_branch
      %74 = sbr.rel (0) target = $region25
    $region24: #{shared_swarm_memory_forward.1} parent=1 // pred_region
      %76 = dma.done [#allocation6], 2048
    $region25: #{shared_swarm_memory_forward.1} parent=1 // pred_fallthru
      _
    // Predicated region
    $region26: #{shared_swarm_memory_forward.1} parent=1 // pred_check
      _
    $region27: #{shared_swarm_memory_forward.1} parent=1 // pred_check_branch
      %78 = sbr.rel (0) target = $region29
    $region28: #{shared_swarm_memory_forward.1} parent=1 // pred_region
      %80 = dma.done [#allocation6], 64
    $region29: #{shared_swarm_memory_forward.1} parent=1 // pred_fallthru
      _
    // Predicated region
    $region30: #{shared_swarm_memory_forward.1} parent=1 // pred_check
      _
    $region31: #{shared_swarm_memory_forward.1} parent=1 // pred_check_branch
      %82 = sbr.rel (0) target = $region33
    $region32: #{shared_swarm_memory_forward.1} parent=1 // pred_region
      %84 = dma.done [#allocation9], 256
    $region33: #{shared_swarm_memory_forward.1} parent=1 // pred_fallthru
      _
    %v85 = vld [vmem:[#allocation8] sm:$0xff]
    %v86 = vld [vmem:[#allocation8 + $0x8] sm:$0xff]
    %v87 = vld [vmem:[#allocation2] sm:$0x3]
    %v88 = vld [vmem:[#allocation5] sm:$0xff]
    %v89 = vld [vmem:[#allocation5 + $0x8] sm:$0xff]
    %v90 = vld [vmem:[#allocation5 + $0x10] sm:$0xff]
    %v91 = vld [vmem:[#allocation5 + $0x18] sm:$0xff]
    %v92 = vld [vmem:[#allocation7] sm:$0x1]
    %v94 = vperm.slane %v92, 0
    %vm96 = vcmask 261120
    %v98 = vsel %vm96, %v87, 0
    %100 = vmatpush.msra.mxu0 0.0
    %101 = vmatpush.msra.mxu0 0.0
    %102 = vmatpush.msra.mxu0 0.0
    %103 = vmatpush.msra.mxu0 0.0
    %104 = vmatpush.msra.mxu0 0.0
    %105 = vmatpush.msra.mxu0 0.0
    %106 = vmatpush.msra.mxu0 0.0
    %107 = vmatpush.msra.mxu0 0.0
    %108 = vmatpush.msra.mxu0 0.0
    %109 = vmatpush.msra.mxu0 0.0
    %110 = vmatpush.msra.mxu0 0.0
    %111 = vmatpush.msra.mxu0 0.0
    %v112 = vand.u32 %v91, 4294901760
    %113 = vmatpush.msra.mxu0 %v112
    %v114 = vand.u32 %v90, 4294901760
    %115 = vmatpush.msra.mxu0 %v114
    %v116 = vand.u32 %v89, 4294901760
    %117 = vmatpush.msra.mxu0 %v116
    %v118 = vand.u32 %v88, 4294901760
    %119 = vmatpush.msra.mxu0 %v118
    %v120 = vand.u32 %v98, 4294901760
    %v121 = vsub.f32 %v98, %v120
    %v122 = vand.u32 %v121, 4294901760
    %v123 = vsub.f32 %v121, %v122
    %v124 = vand.u32 %v123, 4294901760
    %125 = vmatmul.f32.gmra.mxu0 %v124
    %v126 = vpop.f32.mrf.mxu0
    %v127 = vadd.f32 %v94, %v126
    %128 = vdwg.mxu0
    %129 = vmatpush.msra.mxu0 0.0
    %130 = vmatpush.msra.mxu0 0.0
    %131 = vmatpush.msra.mxu0 0.0
    %132 = vmatpush.msra.mxu0 0.0
    %133 = vmatpush.msra.mxu0 0.0
    %134 = vmatpush.msra.mxu0 0.0
    %135 = vmatpush.msra.mxu0 0.0
    %136 = vmatpush.msra.mxu0 0.0
    %137 = vmatpush.msra.mxu0 0.0
    %138 = vmatpush.msra.mxu0 0.0
    %139 = vmatpush.msra.mxu0 0.0
    %140 = vmatpush.msra.mxu0 0.0
    %v141 = vand.u32 %v91, 4294901760
    %v142 = vsub.f32 %v91, %v141
    %v143 = vand.u32 %v142, 4294901760
    %v144 = vsub.f32 %v142, %v143
    %v145 = vand.u32 %v144, 4294901760
    %146 = vmatpush.msra.mxu0 %v145
    %v147 = vand.u32 %v90, 4294901760
    %v148 = vsub.f32 %v90, %v147
    %v149 = vand.u32 %v148, 4294901760
    %v150 = vsub.f32 %v148, %v149
    %v151 = vand.u32 %v150, 4294901760
    %152 = vmatpush.msra.mxu0 %v151
    %v153 = vand.u32 %v89, 4294901760
    %v154 = vsub.f32 %v89, %v153
    %v155 = vand.u32 %v154, 4294901760
    %v156 = vsub.f32 %v154, %v155
    %v157 = vand.u32 %v156, 4294901760
    %158 = vmatpush.msra.mxu0 %v157
    %v159 = vand.u32 %v88, 4294901760
    %v160 = vsub.f32 %v88, %v159
    %v161 = vand.u32 %v160, 4294901760
    %v162 = vsub.f32 %v160, %v161
    %v163 = vand.u32 %v162, 4294901760
    %164 = vmatpush.msra.mxu0 %v163
    %v165 = vand.u32 %v98, 4294901760
    %166 = vmatmul.f32.gmra.mxu0 %v165
    %v167 = vpop.f32.mrf.mxu0
    %v168 = vadd.f32 %v127, %v167
    %169 = vdwg.mxu0
    %170 = vmatpush.msra.mxu0 0.0
    %171 = vmatpush.msra.mxu0 0.0
    %172 = vmatpush.msra.mxu0 0.0
    %173 = vmatpush.msra.mxu0 0.0
    %174 = vmatpush.msra.mxu0 0.0
    %175 = vmatpush.msra.mxu0 0.0
    %176 = vmatpush.msra.mxu0 0.0
    %177 = vmatpush.msra.mxu0 0.0
    %178 = vmatpush.msra.mxu0 0.0
    %179 = vmatpush.msra.mxu0 0.0
    %180 = vmatpush.msra.mxu0 0.0
    %181 = vmatpush.msra.mxu0 0.0
    %v182 = vand.u32 %v91, 4294901760
    %v183 = vsub.f32 %v91, %v182
    %184 = vmatpush.msra.mxu0 %v183
    %v185 = vand.u32 %v90, 4294901760
    %v186 = vsub.f32 %v90, %v185
    %187 = vmatpush.msra.mxu0 %v186
    %v188 = vand.u32 %v89, 4294901760
    %v189 = vsub.f32 %v89, %v188
    %190 = vmatpush.msra.mxu0 %v189
    %v191 = vand.u32 %v88, 4294901760
    %v192 = vsub.f32 %v88, %v191
    %193 = vmatpush.msra.mxu0 %v192
    %v194 = vand.u32 %v98, 4294901760
    %v195 = vsub.f32 %v98, %v194
    %196 = vmatmul.f32.gmra.mxu0 %v195
    %v197 = vpop.f32.mrf.mxu0
    %v198 = vadd.f32 %v168, %v197
    %199 = vdwg.mxu0
    %200 = vmatpush.msra.mxu0 0.0
    %201 = vmatpush.msra.mxu0 0.0
    %202 = vmatpush.msra.mxu0 0.0
    %203 = vmatpush.msra.mxu0 0.0
    %204 = vmatpush.msra.mxu0 0.0
    %205 = vmatpush.msra.mxu0 0.0
    %206 = vmatpush.msra.mxu0 0.0
    %207 = vmatpush.msra.mxu0 0.0
    %208 = vmatpush.msra.mxu0 0.0
    %209 = vmatpush.msra.mxu0 0.0
    %210 = vmatpush.msra.mxu0 0.0
    %211 = vmatpush.msra.mxu0 0.0
    %v212 = vand.u32 %v91, 4294901760
    %213 = vmatpush.msra.mxu0 %v212
    %v214 = vand.u32 %v90, 4294901760
    %215 = vmatpush.msra.mxu0 %v214
    %v216 = vand.u32 %v89, 4294901760
    %217 = vmatpush.msra.mxu0 %v216
    %v218 = vand.u32 %v88, 4294901760
    %219 = vmatpush.msra.mxu0 %v218
    %v220 = vand.u32 %v98, 4294901760
    %v221 = vsub.f32 %v98, %v220
    %v222 = vand.u32 %v221, 4294901760
    %223 = vmatmul.f32.gmra.mxu0 %v222
    %v224 = vpop.f32.mrf.mxu0
    %v225 = vadd.f32 %v198, %v224
    %226 = vdwg.mxu0
    %227 = vmatpush.msra.mxu0 0.0
    %228 = vmatpush.msra.mxu0 0.0
    %229 = vmatpush.msra.mxu0 0.0
    %230 = vmatpush.msra.mxu0 0.0
    %231 = vmatpush.msra.mxu0 0.0
    %232 = vmatpush.msra.mxu0 0.0
    %233 = vmatpush.msra.mxu0 0.0
    %234 = vmatpush.msra.mxu0 0.0
    %235 = vmatpush.msra.mxu0 0.0
    %236 = vmatpush.msra.mxu0 0.0
    %237 = vmatpush.msra.mxu0 0.0
    %238 = vmatpush.msra.mxu0 0.0
    %v239 = vand.u32 %v91, 4294901760
    %v240 = vsub.f32 %v91, %v239
    %v241 = vand.u32 %v240, 4294901760
    %242 = vmatpush.msra.mxu0 %v241
    %v243 = vand.u32 %v90, 4294901760
    %v244 = vsub.f32 %v90, %v243
    %v245 = vand.u32 %v244, 4294901760
    %246 = vmatpush.msra.mxu0 %v245
    %v247 = vand.u32 %v89, 4294901760
    %v248 = vsub.f32 %v89, %v247
    %v249 = vand.u32 %v248, 4294901760
    %250 = vmatpush.msra.mxu0 %v249
    %v251 = vand.u32 %v88, 4294901760
    %v252 = vsub.f32 %v88, %v251
    %v253 = vand.u32 %v252, 4294901760
    %254 = vmatpush.msra.mxu0 %v253
    %v255 = vand.u32 %v98, 4294901760
    %256 = vmatmul.f32.gmra.mxu0 %v255
    %v257 = vpop.f32.mrf.mxu0
    %v258 = vadd.f32 %v225, %v257
    %259 = vdwg.mxu0
    %260 = vmatpush.msra.mxu0 0.0
    %261 = vmatpush.msra.mxu0 0.0
    %262 = vmatpush.msra.mxu0 0.0
    %263 = vmatpush.msra.mxu0 0.0
    %264 = vmatpush.msra.mxu0 0.0
    %265 = vmatpush.msra.mxu0 0.0
    %266 = vmatpush.msra.mxu0 0.0
    %267 = vmatpush.msra.mxu0 0.0
    %268 = vmatpush.msra.mxu0 0.0
    %269 = vmatpush.msra.mxu0 0.0
    %270 = vmatpush.msra.mxu0 0.0
    %271 = vmatpush.msra.mxu0 0.0
    %v272 = vand.u32 %v91, 4294901760
    %273 = vmatpush.msra.mxu0 %v272
    %v274 = vand.u32 %v90, 4294901760
    %275 = vmatpush.msra.mxu0 %v274
    %v276 = vand.u32 %v89, 4294901760
    %277 = vmatpush.msra.mxu0 %v276
    %v278 = vand.u32 %v88, 4294901760
    %279 = vmatpush.msra.mxu0 %v278
    %v280 = vand.u32 %v98, 4294901760
    %281 = vmatmul.f32.gmra.mxu0 %v280
    %v282 = vpop.f32.mrf.mxu0
    %v283 = vadd.f32 %v258, %v282
    %284 = vdwg.mxu0
    %v285 = vmul.f32 %v283, 0.17677669
    %s286 = scalar_lea.vmem [#allocation2], 2
    %v287 = vld [vmem:[%s286] sm:$0x3]
    %s288 = scalar_lea.vmem [#allocation5], 32
    %v289 = vld [vmem:[%s288] sm:$0xff]
    %v290 = vld [vmem:[%s288 + $0x8] sm:$0xff]
    %v291 = vld [vmem:[%s288 + $0x10] sm:$0xff]
    %v292 = vld [vmem:[%s288 + $0x18] sm:$0xff]
    %s293 = scalar_lea.vmem [#allocation7], 1
    %v294 = vld [vmem:[%s293] sm:$0x1]
    %v296 = vperm.slane %v294, 0
    %v299 = vsel %vm96, %v287, 0
    %301 = vmatpush.msra.mxu0 0.0
    %302 = vmatpush.msra.mxu0 0.0
    %303 = vmatpush.msra.mxu0 0.0
    %304 = vmatpush.msra.mxu0 0.0
    %305 = vmatpush.msra.mxu0 0.0
    %306 = vmatpush.msra.mxu0 0.0
    %307 = vmatpush.msra.mxu0 0.0
    %308 = vmatpush.msra.mxu0 0.0
    %309 = vmatpush.msra.mxu0 0.0
    %310 = vmatpush.msra.mxu0 0.0
    %311 = vmatpush.msra.mxu0 0.0
    %312 = vmatpush.msra.mxu0 0.0
    %v313 = vand.u32 %v292, 4294901760
    %314 = vmatpush.msra.mxu0 %v313
    %v315 = vand.u32 %v291, 4294901760
    %316 = vmatpush.msra.mxu0 %v315
    %v317 = vand.u32 %v290, 4294901760
    %318 = vmatpush.msra.mxu0 %v317
    %v319 = vand.u32 %v289, 4294901760
    %320 = vmatpush.msra.mxu0 %v319
    %v321 = vand.u32 %v299, 4294901760
    %v322 = vsub.f32 %v299, %v321
    %v323 = vand.u32 %v322, 4294901760
    %v324 = vsub.f32 %v322, %v323
    %v325 = vand.u32 %v324, 4294901760
    %326 = vmatmul.f32.gmra.mxu0 %v325
    %v327 = vpop.f32.mrf.mxu0
    %v328 = vadd.f32 %v296, %v327
    %329 = vdwg.mxu0
    %330 = vmatpush.msra.mxu0 0.0
    %331 = vmatpush.msra.mxu0 0.0
    %332 = vmatpush.msra.mxu0 0.0
    %333 = vmatpush.msra.mxu0 0.0
    %334 = vmatpush.msra.mxu0 0.0
    %335 = vmatpush.msra.mxu0 0.0
    %336 = vmatpush.msra.mxu0 0.0
    %337 = vmatpush.msra.mxu0 0.0
    %338 = vmatpush.msra.mxu0 0.0
    %339 = vmatpush.msra.mxu0 0.0
    %340 = vmatpush.msra.mxu0 0.0
    %341 = vmatpush.msra.mxu0 0.0
    %v342 = vand.u32 %v292, 4294901760
    %v343 = vsub.f32 %v292, %v342
    %v344 = vand.u32 %v343, 4294901760
    %v345 = vsub.f32 %v343, %v344
    %v346 = vand.u32 %v345, 4294901760
    %347 = vmatpush.msra.mxu0 %v346
    %v348 = vand.u32 %v291, 4294901760
    %v349 = vsub.f32 %v291, %v348
    %v350 = vand.u32 %v349, 4294901760
    %v351 = vsub.f32 %v349, %v350
    %v352 = vand.u32 %v351, 4294901760
    %353 = vmatpush.msra.mxu0 %v352
    %v354 = vand.u32 %v290, 4294901760
    %v355 = vsub.f32 %v290, %v354
    %v356 = vand.u32 %v355, 4294901760
    %v357 = vsub.f32 %v355, %v356
    %v358 = vand.u32 %v357, 4294901760
    %359 = vmatpush.msra.mxu0 %v358
    %v360 = vand.u32 %v289, 4294901760
    %v361 = vsub.f32 %v289, %v360
    %v362 = vand.u32 %v361, 4294901760
    %v363 = vsub.f32 %v361, %v362
    %v364 = vand.u32 %v363, 4294901760
    %365 = vmatpush.msra.mxu0 %v364
    %v366 = vand.u32 %v299, 4294901760
    %367 = vmatmul.f32.gmra.mxu0 %v366
    %v368 = vpop.f32.mrf.mxu0
    %v369 = vadd.f32 %v328, %v368
    %370 = vdwg.mxu0
    %371 = vmatpush.msra.mxu0 0.0
    %372 = vmatpush.msra.mxu0 0.0
    %373 = vmatpush.msra.mxu0 0.0
    %374 = vmatpush.msra.mxu0 0.0
    %375 = vmatpush.msra.mxu0 0.0
    %376 = vmatpush.msra.mxu0 0.0
    %377 = vmatpush.msra.mxu0 0.0
    %378 = vmatpush.msra.mxu0 0.0
    %379 = vmatpush.msra.mxu0 0.0
    %380 = vmatpush.msra.mxu0 0.0
    %381 = vmatpush.msra.mxu0 0.0
    %382 = vmatpush.msra.mxu0 0.0
    %v383 = vand.u32 %v292, 4294901760
    %v384 = vsub.f32 %v292, %v383
    %385 = vmatpush.msra.mxu0 %v384
    %v386 = vand.u32 %v291, 4294901760
    %v387 = vsub.f32 %v291, %v386
    %388 = vmatpush.msra.mxu0 %v387
    %v389 = vand.u32 %v290, 4294901760
    %v390 = vsub.f32 %v290, %v389
    %391 = vmatpush.msra.mxu0 %v390
    %v392 = vand.u32 %v289, 4294901760
    %v393 = vsub.f32 %v289, %v392
    %394 = vmatpush.msra.mxu0 %v393
    %v395 = vand.u32 %v299, 4294901760
    %v396 = vsub.f32 %v299, %v395
    %397 = vmatmul.f32.gmra.mxu0 %v396
    %v398 = vpop.f32.mrf.mxu0
    %v399 = vadd.f32 %v369, %v398
    %400 = vdwg.mxu0
    %401 = vmatpush.msra.mxu0 0.0
    %402 = vmatpush.msra.mxu0 0.0
    %403 = vmatpush.msra.mxu0 0.0
    %404 = vmatpush.msra.mxu0 0.0
    %405 = vmatpush.msra.mxu0 0.0
    %406 = vmatpush.msra.mxu0 0.0
    %407 = vmatpush.msra.mxu0 0.0
    %408 = vmatpush.msra.mxu0 0.0
    %409 = vmatpush.msra.mxu0 0.0
    %410 = vmatpush.msra.mxu0 0.0
    %411 = vmatpush.msra.mxu0 0.0
    %412 = vmatpush.msra.mxu0 0.0
    %v413 = vand.u32 %v292, 4294901760
    %414 = vmatpush.msra.mxu0 %v413
    %v415 = vand.u32 %v291, 4294901760
    %416 = vmatpush.msra.mxu0 %v415
    %v417 = vand.u32 %v290, 4294901760
    %418 = vmatpush.msra.mxu0 %v417
    %v419 = vand.u32 %v289, 4294901760
    %420 = vmatpush.msra.mxu0 %v419
    %v421 = vand.u32 %v299, 4294901760
    %v422 = vsub.f32 %v299, %v421
    %v423 = vand.u32 %v422, 4294901760
    %424 = vmatmul.f32.gmra.mxu0 %v423
    %v425 = vpop.f32.mrf.mxu0
    %v426 = vadd.f32 %v399, %v425
    %427 = vdwg.mxu0
    %428 = vmatpush.msra.mxu0 0.0
    %429 = vmatpush.msra.mxu0 0.0
    %430 = vmatpush.msra.mxu0 0.0
    %431 = vmatpush.msra.mxu0 0.0
    %432 = vmatpush.msra.mxu0 0.0
    %433 = vmatpush.msra.mxu0 0.0
    %434 = vmatpush.msra.mxu0 0.0
    %435 = vmatpush.msra.mxu0 0.0
    %436 = vmatpush.msra.mxu0 0.0
    %437 = vmatpush.msra.mxu0 0.0
    %438 = vmatpush.msra.mxu0 0.0
    %439 = vmatpush.msra.mxu0 0.0
    %v440 = vand.u32 %v292, 4294901760
    %v441 = vsub.f32 %v292, %v440
    %v442 = vand.u32 %v441, 4294901760
    %443 = vmatpush.msra.mxu0 %v442
    %v444 = vand.u32 %v291, 4294901760
    %v445 = vsub.f32 %v291, %v444
    %v446 = vand.u32 %v445, 4294901760
    %447 = vmatpush.msra.mxu0 %v446
    %v448 = vand.u32 %v290, 4294901760
    %v449 = vsub.f32 %v290, %v448
    %v450 = vand.u32 %v449, 4294901760
    %451 = vmatpush.msra.mxu0 %v450
    %v452 = vand.u32 %v289, 4294901760
    %v453 = vsub.f32 %v289, %v452
    %v454 = vand.u32 %v453, 4294901760
    %455 = vmatpush.msra.mxu0 %v454
    %v456 = vand.u32 %v299, 4294901760
    %457 = vmatmul.f32.gmra.mxu0 %v456
    %v458 = vpop.f32.mrf.mxu0
    %v459 = vadd.f32 %v426, %v458
    %460 = vdwg.mxu0
    %461 = vmatpush.msra.mxu0 0.0
    %462 = vmatpush.msra.mxu0 0.0
    %463 = vmatpush.msra.mxu0 0.0
    %464 = vmatpush.msra.mxu0 0.0
    %465 = vmatpush.msra.mxu0 0.0
    %466 = vmatpush.msra.mxu0 0.0
    %467 = vmatpush.msra.mxu0 0.0
    %468 = vmatpush.msra.mxu0 0.0
    %469 = vmatpush.msra.mxu0 0.0
    %470 = vmatpush.msra.mxu0 0.0
    %471 = vmatpush.msra.mxu0 0.0
    %472 = vmatpush.msra.mxu0 0.0
    %v473 = vand.u32 %v292, 4294901760
    %474 = vmatpush.msra.mxu0 %v473
    %v475 = vand.u32 %v291, 4294901760
    %476 = vmatpush.msra.mxu0 %v475
    %v477 = vand.u32 %v290, 4294901760
    %478 = vmatpush.msra.mxu0 %v477
    %v479 = vand.u32 %v289, 4294901760
    %480 = vmatpush.msra.mxu0 %v479
    %v481 = vand.u32 %v299, 4294901760
    %482 = vmatmul.f32.gmra.mxu0 %v481
    %v483 = vpop.f32.mrf.mxu0
    %v484 = vadd.f32 %v459, %v483
    %485 = vdwg.mxu0
    %v486 = vmul.f32 %v484, 0.17677669
    %s487 = scalar_lea.vmem [#allocation2], 4
    %v488 = vld [vmem:[%s487] sm:$0x3]
    %s489 = scalar_lea.vmem [#allocation5], 64
    %v490 = vld [vmem:[%s489] sm:$0xff]
    %v491 = vld [vmem:[%s489 + $0x8] sm:$0xff]
    %v492 = vld [vmem:[%s489 + $0x10] sm:$0xff]
    %v493 = vld [vmem:[%s489 + $0x18] sm:$0xff]
    %s494 = scalar_lea.vmem [#allocation7], 2
    %v495 = vld [vmem:[%s494] sm:$0x1]
    %v497 = vperm.slane %v495, 0
    %v500 = vsel %vm96, %v488, 0
    %502 = vmatpush.msra.mxu0 0.0
    %503 = vmatpush.msra.mxu0 0.0
    %504 = vmatpush.msra.mxu0 0.0
    %505 = vmatpush.msra.mxu0 0.0
    %506 = vmatpush.msra.mxu0 0.0
    %507 = vmatpush.msra.mxu0 0.0
    %508 = vmatpush.msra.mxu0 0.0
    %509 = vmatpush.msra.mxu0 0.0
    %510 = vmatpush.msra.mxu0 0.0
    %511 = vmatpush.msra.mxu0 0.0
    %512 = vmatpush.msra.mxu0 0.0
    %513 = vmatpush.msra.mxu0 0.0
    %v514 = vand.u32 %v493, 4294901760
    %515 = vmatpush.msra.mxu0 %v514
    %v516 = vand.u32 %v492, 4294901760
    %517 = vmatpush.msra.mxu0 %v516
    %v518 = vand.u32 %v491, 4294901760
    %519 = vmatpush.msra.mxu0 %v518
    %v520 = vand.u32 %v490, 4294901760
    %521 = vmatpush.msra.mxu0 %v520
    %v522 = vand.u32 %v500, 4294901760
    %v523 = vsub.f32 %v500, %v522
    %v524 = vand.u32 %v523, 4294901760
    %v525 = vsub.f32 %v523, %v524
    %v526 = vand.u32 %v525, 4294901760
    %527 = vmatmul.f32.gmra.mxu0 %v526
    %v528 = vpop.f32.mrf.mxu0
    %v529 = vadd.f32 %v497, %v528
    %530 = vdwg.mxu0
    %531 = vmatpush.msra.mxu0 0.0
    %532 = vmatpush.msra.mxu0 0.0
    %533 = vmatpush.msra.mxu0 0.0
    %534 = vmatpush.msra.mxu0 0.0
    %535 = vmatpush.msra.mxu0 0.0
    %536 = vmatpush.msra.mxu0 0.0
    %537 = vmatpush.msra.mxu0 0.0
    %538 = vmatpush.msra.mxu0 0.0
    %539 = vmatpush.msra.mxu0 0.0
    %540 = vmatpush.msra.mxu0 0.0
    %541 = vmatpush.msra.mxu0 0.0
    %542 = vmatpush.msra.mxu0 0.0
    %v543 = vand.u32 %v493, 4294901760
    %v544 = vsub.f32 %v493, %v543
    %v545 = vand.u32 %v544, 4294901760
    %v546 = vsub.f32 %v544, %v545
    %v547 = vand.u32 %v546, 4294901760
    %548 = vmatpush.msra.mxu0 %v547
    %v549 = vand.u32 %v492, 4294901760
    %v550 = vsub.f32 %v492, %v549
    %v551 = vand.u32 %v550, 4294901760
    %v552 = vsub.f32 %v550, %v551
    %v553 = vand.u32 %v552, 4294901760
    %554 = vmatpush.msra.mxu0 %v553
    %v555 = vand.u32 %v491, 4294901760
    %v556 = vsub.f32 %v491, %v555
    %v557 = vand.u32 %v556, 4294901760
    %v558 = vsub.f32 %v556, %v557
    %v559 = vand.u32 %v558, 4294901760
    %560 = vmatpush.msra.mxu0 %v559
    %v561 = vand.u32 %v490, 4294901760
    %v562 = vsub.f32 %v490, %v561
    %v563 = vand.u32 %v562, 4294901760
    %v564 = vsub.f32 %v562, %v563
    %v565 = vand.u32 %v564, 4294901760
    %566 = vmatpush.msra.mxu0 %v565
    %v567 = vand.u32 %v500, 4294901760
    %568 = vmatmul.f32.gmra.mxu0 %v567
    %v569 = vpop.f32.mrf.mxu0
    %v570 = vadd.f32 %v529, %v569
    %571 = vdwg.mxu0
    %572 = vmatpush.msra.mxu0 0.0
    %573 = vmatpush.msra.mxu0 0.0
    %574 = vmatpush.msra.mxu0 0.0
    %575 = vmatpush.msra.mxu0 0.0
    %576 = vmatpush.msra.mxu0 0.0
    %577 = vmatpush.msra.mxu0 0.0
    %578 = vmatpush.msra.mxu0 0.0
    %579 = vmatpush.msra.mxu0 0.0
    %580 = vmatpush.msra.mxu0 0.0
    %581 = vmatpush.msra.mxu0 0.0
    %582 = vmatpush.msra.mxu0 0.0
    %583 = vmatpush.msra.mxu0 0.0
    %v584 = vand.u32 %v493, 4294901760
    %v585 = vsub.f32 %v493, %v584
    %586 = vmatpush.msra.mxu0 %v585
    %v587 = vand.u32 %v492, 4294901760
    %v588 = vsub.f32 %v492, %v587
    %589 = vmatpush.msra.mxu0 %v588
    %v590 = vand.u32 %v491, 4294901760
    %v591 = vsub.f32 %v491, %v590
    %592 = vmatpush.msra.mxu0 %v591
    %v593 = vand.u32 %v490, 4294901760
    %v594 = vsub.f32 %v490, %v593
    %595 = vmatpush.msra.mxu0 %v594
    %v596 = vand.u32 %v500, 4294901760
    %v597 = vsub.f32 %v500, %v596
    %598 = vmatmul.f32.gmra.mxu0 %v597
    %v599 = vpop.f32.mrf.mxu0
    %v600 = vadd.f32 %v570, %v599
    %601 = vdwg.mxu0
    %602 = vmatpush.msra.mxu0 0.0
    %603 = vmatpush.msra.mxu0 0.0
    %604 = vmatpush.msra.mxu0 0.0
    %605 = vmatpush.msra.mxu0 0.0
    %606 = vmatpush.msra.mxu0 0.0
    %607 = vmatpush.msra.mxu0 0.0
    %608 = vmatpush.msra.mxu0 0.0
    %609 = vmatpush.msra.mxu0 0.0
    %610 = vmatpush.msra.mxu0 0.0
    %611 = vmatpush.msra.mxu0 0.0
    %612 = vmatpush.msra.mxu0 0.0
    %613 = vmatpush.msra.mxu0 0.0
    %v614 = vand.u32 %v493, 4294901760
    %615 = vmatpush.msra.mxu0 %v614
    %v616 = vand.u32 %v492, 4294901760
    %617 = vmatpush.msra.mxu0 %v616
    %v618 = vand.u32 %v491, 4294901760
    %619 = vmatpush.msra.mxu0 %v618
    %v620 = vand.u32 %v490, 4294901760
    %621 = vmatpush.msra.mxu0 %v620
    %v622 = vand.u32 %v500, 4294901760
    %v623 = vsub.f32 %v500, %v622
    %v624 = vand.u32 %v623, 4294901760
    %625 = vmatmul.f32.gmra.mxu0 %v624
    %v626 = vpop.f32.mrf.mxu0
    %v627 = vadd.f32 %v600, %v626
    %628 = vdwg.mxu0
    %629 = vmatpush.msra.mxu0 0.0
    %630 = vmatpush.msra.mxu0 0.0
    %631 = vmatpush.msra.mxu0 0.0
    %632 = vmatpush.msra.mxu0 0.0
    %633 = vmatpush.msra.mxu0 0.0
    %634 = vmatpush.msra.mxu0 0.0
    %635 = vmatpush.msra.mxu0 0.0
    %636 = vmatpush.msra.mxu0 0.0
    %637 = vmatpush.msra.mxu0 0.0
    %638 = vmatpush.msra.mxu0 0.0
    %639 = vmatpush.msra.mxu0 0.0
    %640 = vmatpush.msra.mxu0 0.0
    %v641 = vand.u32 %v493, 4294901760
    %v642 = vsub.f32 %v493, %v641
    %v643 = vand.u32 %v642, 4294901760
    %644 = vmatpush.msra.mxu0 %v643
    %v645 = vand.u32 %v492, 4294901760
    %v646 = vsub.f32 %v492, %v645
    %v647 = vand.u32 %v646, 4294901760
    %648 = vmatpush.msra.mxu0 %v647
    %v649 = vand.u32 %v491, 4294901760
    %v650 = vsub.f32 %v491, %v649
    %v651 = vand.u32 %v650, 4294901760
    %652 = vmatpush.msra.mxu0 %v651
    %v653 = vand.u32 %v490, 4294901760
    %v654 = vsub.f32 %v490, %v653
    %v655 = vand.u32 %v654, 4294901760
    %656 = vmatpush.msra.mxu0 %v655
    %v657 = vand.u32 %v500, 4294901760
    %658 = vmatmul.f32.gmra.mxu0 %v657
    %v659 = vpop.f32.mrf.mxu0
    %v660 = vadd.f32 %v627, %v659
    %661 = vdwg.mxu0
    %662 = vmatpush.msra.mxu0 0.0
    %663 = vmatpush.msra.mxu0 0.0
    %664 = vmatpush.msra.mxu0 0.0
    %665 = vmatpush.msra.mxu0 0.0
    %666 = vmatpush.msra.mxu0 0.0
    %667 = vmatpush.msra.mxu0 0.0
    %668 = vmatpush.msra.mxu0 0.0
    %669 = vmatpush.msra.mxu0 0.0
    %670 = vmatpush.msra.mxu0 0.0
    %671 = vmatpush.msra.mxu0 0.0
    %672 = vmatpush.msra.mxu0 0.0
    %673 = vmatpush.msra.mxu0 0.0
    %v674 = vand.u32 %v493, 4294901760
    %675 = vmatpush.msra.mxu0 %v674
    %v676 = vand.u32 %v492, 4294901760
    %677 = vmatpush.msra.mxu0 %v676
    %v678 = vand.u32 %v491, 4294901760
    %679 = vmatpush.msra.mxu0 %v678
    %v680 = vand.u32 %v490, 4294901760
    %681 = vmatpush.msra.mxu0 %v680
    %v682 = vand.u32 %v500, 4294901760
    %683 = vmatmul.f32.gmra.mxu0 %v682
    %v684 = vpop.f32.mrf.mxu0
    %v685 = vadd.f32 %v660, %v684
    %686 = vdwg.mxu0
    %v687 = vmul.f32 %v685, 0.17677669
    %s688 = scalar_lea.vmem [#allocation2], 6
    %v689 = vld [vmem:[%s688] sm:$0x3]
    %s690 = scalar_lea.vmem [#allocation5], 96
    %v691 = vld [vmem:[%s690] sm:$0xff]
    %v692 = vld [vmem:[%s690 + $0x8] sm:$0xff]
    %v693 = vld [vmem:[%s690 + $0x10] sm:$0xff]
    %v694 = vld [vmem:[%s690 + $0x18] sm:$0xff]
    %s695 = scalar_lea.vmem [#allocation7], 3
    %v696 = vld [vmem:[%s695] sm:$0x1]
    %v698 = vperm.slane %v696, 0
    %v701 = vsel %vm96, %v689, 0
    %703 = vmatpush.msra.mxu0 0.0
    %704 = vmatpush.msra.mxu0 0.0
    %705 = vmatpush.msra.mxu0 0.0
    %706 = vmatpush.msra.mxu0 0.0
    %707 = vmatpush.msra.mxu0 0.0
    %708 = vmatpush.msra.mxu0 0.0
    %709 = vmatpush.msra.mxu0 0.0
    %710 = vmatpush.msra.mxu0 0.0
    %711 = vmatpush.msra.mxu0 0.0
    %712 = vmatpush.msra.mxu0 0.0
    %713 = vmatpush.msra.mxu0 0.0
    %714 = vmatpush.msra.mxu0 0.0
    %v715 = vand.u32 %v694, 4294901760
    %716 = vmatpush.msra.mxu0 %v715
    %v717 = vand.u32 %v693, 4294901760
    %718 = vmatpush.msra.mxu0 %v717
    %v719 = vand.u32 %v692, 4294901760
    %720 = vmatpush.msra.mxu0 %v719
    %v721 = vand.u32 %v691, 4294901760
    %722 = vmatpush.msra.mxu0 %v721
    %v723 = vand.u32 %v701, 4294901760
    %v724 = vsub.f32 %v701, %v723
    %v725 = vand.u32 %v724, 4294901760
    %v726 = vsub.f32 %v724, %v725
    %v727 = vand.u32 %v726, 4294901760
    %728 = vmatmul.f32.gmra.mxu0 %v727
    %v729 = vpop.f32.mrf.mxu0
    %v730 = vadd.f32 %v698, %v729
    %731 = vdwg.mxu0
    %732 = vmatpush.msra.mxu0 0.0
    %733 = vmatpush.msra.mxu0 0.0
    %734 = vmatpush.msra.mxu0 0.0
    %735 = vmatpush.msra.mxu0 0.0
    %736 = vmatpush.msra.mxu0 0.0
    %737 = vmatpush.msra.mxu0 0.0
    %738 = vmatpush.msra.mxu0 0.0
    %739 = vmatpush.msra.mxu0 0.0
    %740 = vmatpush.msra.mxu0 0.0
    %741 = vmatpush.msra.mxu0 0.0
    %742 = vmatpush.msra.mxu0 0.0
    %743 = vmatpush.msra.mxu0 0.0
    %v744 = vand.u32 %v694, 4294901760
    %v745 = vsub.f32 %v694, %v744
    %v746 = vand.u32 %v745, 4294901760
    %v747 = vsub.f32 %v745, %v746
    %v748 = vand.u32 %v747, 4294901760
    %749 = vmatpush.msra.mxu0 %v748
    %v750 = vand.u32 %v693, 4294901760
    %v751 = vsub.f32 %v693, %v750
    %v752 = vand.u32 %v751, 4294901760
    %v753 = vsub.f32 %v751, %v752
    %v754 = vand.u32 %v753, 4294901760
    %755 = vmatpush.msra.mxu0 %v754
    %v756 = vand.u32 %v692, 4294901760
    %v757 = vsub.f32 %v692, %v756
    %v758 = vand.u32 %v757, 4294901760
    %v759 = vsub.f32 %v757, %v758
    %v760 = vand.u32 %v759, 4294901760
    %761 = vmatpush.msra.mxu0 %v760
    %v762 = vand.u32 %v691, 4294901760
    %v763 = vsub.f32 %v691, %v762
    %v764 = vand.u32 %v763, 4294901760
    %v765 = vsub.f32 %v763, %v764
    %v766 = vand.u32 %v765, 4294901760
    %767 = vmatpush.msra.mxu0 %v766
    %v768 = vand.u32 %v701, 4294901760
    %769 = vmatmul.f32.gmra.mxu0 %v768
    %v770 = vpop.f32.mrf.mxu0
    %v771 = vadd.f32 %v730, %v770
    %772 = vdwg.mxu0
    %773 = vmatpush.msra.mxu0 0.0
    %774 = vmatpush.msra.mxu0 0.0
    %775 = vmatpush.msra.mxu0 0.0
    %776 = vmatpush.msra.mxu0 0.0
    %777 = vmatpush.msra.mxu0 0.0
    %778 = vmatpush.msra.mxu0 0.0
    %779 = vmatpush.msra.mxu0 0.0
    %780 = vmatpush.msra.mxu0 0.0
    %781 = vmatpush.msra.mxu0 0.0
    %782 = vmatpush.msra.mxu0 0.0
    %783 = vmatpush.msra.mxu0 0.0
    %784 = vmatpush.msra.mxu0 0.0
    %v785 = vand.u32 %v694, 4294901760
    %v786 = vsub.f32 %v694, %v785
    %787 = vmatpush.msra.mxu0 %v786
    %v788 = vand.u32 %v693, 4294901760
    %v789 = vsub.f32 %v693, %v788
    %790 = vmatpush.msra.mxu0 %v789
    %v791 = vand.u32 %v692, 4294901760
    %v792 = vsub.f32 %v692, %v791
    %793 = vmatpush.msra.mxu0 %v792
    %v794 = vand.u32 %v691, 4294901760
    %v795 = vsub.f32 %v691, %v794
    %796 = vmatpush.msra.mxu0 %v795
    %v797 = vand.u32 %v701, 4294901760
    %v798 = vsub.f32 %v701, %v797
    %799 = vmatmul.f32.gmra.mxu0 %v798
    %v800 = vpop.f32.mrf.mxu0
    %v801 = vadd.f32 %v771, %v800
    %802 = vdwg.mxu0
    %803 = vmatpush.msra.mxu0 0.0
    %804 = vmatpush.msra.mxu0 0.0
    %805 = vmatpush.msra.mxu0 0.0
    %806 = vmatpush.msra.mxu0 0.0
    %807 = vmatpush.msra.mxu0 0.0
    %808 = vmatpush.msra.mxu0 0.0
    %809 = vmatpush.msra.mxu0 0.0
    %810 = vmatpush.msra.mxu0 0.0
    %811 = vmatpush.msra.mxu0 0.0
    %812 = vmatpush.msra.mxu0 0.0
    %813 = vmatpush.msra.mxu0 0.0
    %814 = vmatpush.msra.mxu0 0.0
    %v815 = vand.u32 %v694, 4294901760
    %816 = vmatpush.msra.mxu0 %v815
    %v817 = vand.u32 %v693, 4294901760
    %818 = vmatpush.msra.mxu0 %v817
    %v819 = vand.u32 %v692, 4294901760
    %820 = vmatpush.msra.mxu0 %v819
    %v821 = vand.u32 %v691, 4294901760
    %822 = vmatpush.msra.mxu0 %v821
    %v823 = vand.u32 %v701, 4294901760
    %v824 = vsub.f32 %v701, %v823
    %v825 = vand.u32 %v824, 4294901760
    %826 = vmatmul.f32.gmra.mxu0 %v825
    %v827 = vpop.f32.mrf.mxu0
    %v828 = vadd.f32 %v801, %v827
    %829 = vdwg.mxu0
    %830 = vmatpush.msra.mxu0 0.0
    %831 = vmatpush.msra.mxu0 0.0
    %832 = vmatpush.msra.mxu0 0.0
    %833 = vmatpush.msra.mxu0 0.0
    %834 = vmatpush.msra.mxu0 0.0
    %835 = vmatpush.msra.mxu0 0.0
    %836 = vmatpush.msra.mxu0 0.0
    %837 = vmatpush.msra.mxu0 0.0
    %838 = vmatpush.msra.mxu0 0.0
    %839 = vmatpush.msra.mxu0 0.0
    %840 = vmatpush.msra.mxu0 0.0
    %841 = vmatpush.msra.mxu0 0.0
    %v842 = vand.u32 %v694, 4294901760
    %v843 = vsub.f32 %v694, %v842
    %v844 = vand.u32 %v843, 4294901760
    %845 = vmatpush.msra.mxu0 %v844
    %v846 = vand.u32 %v693, 4294901760
    %v847 = vsub.f32 %v693, %v846
    %v848 = vand.u32 %v847, 4294901760
    %849 = vmatpush.msra.mxu0 %v848
    %v850 = vand.u32 %v692, 4294901760
    %v851 = vsub.f32 %v692, %v850
    %v852 = vand.u32 %v851, 4294901760
    %853 = vmatpush.msra.mxu0 %v852
    %v854 = vand.u32 %v691, 4294901760
    %v855 = vsub.f32 %v691, %v854
    %v856 = vand.u32 %v855, 4294901760
    %857 = vmatpush.msra.mxu0 %v856
    %v858 = vand.u32 %v701, 4294901760
    %859 = vmatmul.f32.gmra.mxu0 %v858
    %v860 = vpop.f32.mrf.mxu0
    %v861 = vadd.f32 %v828, %v860
    %862 = vdwg.mxu0
    %863 = vmatpush.msra.mxu0 0.0
    %864 = vmatpush.msra.mxu0 0.0
    %865 = vmatpush.msra.mxu0 0.0
    %866 = vmatpush.msra.mxu0 0.0
    %867 = vmatpush.msra.mxu0 0.0
    %868 = vmatpush.msra.mxu0 0.0
    %869 = vmatpush.msra.mxu0 0.0
    %870 = vmatpush.msra.mxu0 0.0
    %871 = vmatpush.msra.mxu0 0.0
    %872 = vmatpush.msra.mxu0 0.0
    %873 = vmatpush.msra.mxu0 0.0
    %874 = vmatpush.msra.mxu0 0.0
    %v875 = vand.u32 %v694, 4294901760
    %876 = vmatpush.msra.mxu0 %v875
    %v877 = vand.u32 %v693, 4294901760
    %878 = vmatpush.msra.mxu0 %v877
    %v879 = vand.u32 %v692, 4294901760
    %880 = vmatpush.msra.mxu0 %v879
    %v881 = vand.u32 %v691, 4294901760
    %882 = vmatpush.msra.mxu0 %v881
    %v883 = vand.u32 %v701, 4294901760
    %884 = vmatmul.f32.gmra.mxu0 %v883
    %v885 = vpop.f32.mrf.mxu0
    %v886 = vadd.f32 %v861, %v885
    %887 = vdwg.mxu0
    %v888 = vmul.f32 %v886, 0.17677669
    %v890 = vrot.slane %v486, 6
    %v893 = vrot.slane %v687, 4
    %v896 = vrot.slane %v888, 2
    %vm898 = vcmask 1041408
    %v899 = vsel %vm898, %v285, %v890
    %vm900 = vcmask 1043456
    %v901 = vsel %vm900, %v899, %v893
    %vm902 = vcmask 1045504
    %v903 = vsel %vm902, %v901, %v896
    %v905 = vsel %vm96, %v903, 0
    %v908 = vsel %vm96, %v85, 0
    %v911 = vsel %vm96, %v86, 0
    %913 = vmatpush.xpose.msra.mxu0 0.0
    %914 = vmatpush.xpose.msra.mxu0 0.0
    %915 = vmatpush.xpose.msra.mxu0 0.0
    %916 = vmatpush.xpose.msra.mxu0 0.0
    %917 = vmatpush.xpose.msra.mxu0 0.0
    %918 = vmatpush.xpose.msra.mxu0 0.0
    %919 = vmatpush.xpose.msra.mxu0 0.0
    %920 = vmatpush.xpose.msra.mxu0 0.0
    %921 = vmatpush.xpose.msra.mxu0 0.0
    %922 = vmatpush.xpose.msra.mxu0 0.0
    %923 = vmatpush.xpose.msra.mxu0 0.0
    %924 = vmatpush.xpose.msra.mxu0 0.0
    %925 = vmatpush.xpose.msra.mxu0 0.0
    %926 = vmatpush.xpose.msra.mxu0 0.0
    %v927 = vand.u32 %v911, 4294901760
    %928 = vmatpush.xpose.msra.mxu0 %v927
    %v929 = vand.u32 %v908, 4294901760
    %930 = vmatpush.xpose.msra.mxu0 %v929
    %v931 = vand.u32 %v905, 4294901760
    %v932 = vsub.f32 %v905, %v931
    %v933 = vand.u32 %v932, 4294901760
    %v934 = vsub.f32 %v932, %v933
    %v935 = vand.u32 %v934, 4294901760
    %936 = vmatmul.f32.gmra.mxu0 %v935
    %v937 = vpop.f32.mrf.mxu0
    %v938 = vadd.f32 0.0, %v937
    %939 = vdwg.mxu0
    %940 = vmatpush.xpose.msra.mxu0 0.0
    %941 = vmatpush.xpose.msra.mxu0 0.0
    %942 = vmatpush.xpose.msra.mxu0 0.0
    %943 = vmatpush.xpose.msra.mxu0 0.0
    %944 = vmatpush.xpose.msra.mxu0 0.0
    %945 = vmatpush.xpose.msra.mxu0 0.0
    %946 = vmatpush.xpose.msra.mxu0 0.0
    %947 = vmatpush.xpose.msra.mxu0 0.0
    %948 = vmatpush.xpose.msra.mxu0 0.0
    %949 = vmatpush.xpose.msra.mxu0 0.0
    %950 = vmatpush.xpose.msra.mxu0 0.0
    %951 = vmatpush.xpose.msra.mxu0 0.0
    %952 = vmatpush.xpose.msra.mxu0 0.0
    %953 = vmatpush.xpose.msra.mxu0 0.0
    %v954 = vand.u32 %v911, 4294901760
    %v955 = vsub.f32 %v911, %v954
    %v956 = vand.u32 %v955, 4294901760
    %v957 = vsub.f32 %v955, %v956
    %v958 = vand.u32 %v957, 4294901760
    %959 = vmatpush.xpose.msra.mxu0 %v958
    %v960 = vand.u32 %v908, 4294901760
    %v961 = vsub.f32 %v908, %v960
    %v962 = vand.u32 %v961, 4294901760
    %v963 = vsub.f32 %v961, %v962
    %v964 = vand.u32 %v963, 4294901760
    %965 = vmatpush.xpose.msra.mxu0 %v964
    %v966 = vand.u32 %v905, 4294901760
    %967 = vmatmul.f32.gmra.mxu0 %v966
    %v968 = vpop.f32.mrf.mxu0
    %v969 = vadd.f32 %v938, %v968
    %970 = vdwg.mxu0
    %971 = vmatpush.xpose.msra.mxu0 0.0
    %972 = vmatpush.xpose.msra.mxu0 0.0
    %973 = vmatpush.xpose.msra.mxu0 0.0
    %974 = vmatpush.xpose.msra.mxu0 0.0
    %975 = vmatpush.xpose.msra.mxu0 0.0
    %976 = vmatpush.xpose.msra.mxu0 0.0
    %977 = vmatpush.xpose.msra.mxu0 0.0
    %978 = vmatpush.xpose.msra.mxu0 0.0
    %979 = vmatpush.xpose.msra.mxu0 0.0
    %980 = vmatpush.xpose.msra.mxu0 0.0
    %981 = vmatpush.xpose.msra.mxu0 0.0
    %982 = vmatpush.xpose.msra.mxu0 0.0
    %983 = vmatpush.xpose.msra.mxu0 0.0
    %984 = vmatpush.xpose.msra.mxu0 0.0
    %v985 = vand.u32 %v911, 4294901760
    %v986 = vsub.f32 %v911, %v985
    %987 = vmatpush.xpose.msra.mxu0 %v986
    %v988 = vand.u32 %v908, 4294901760
    %v989 = vsub.f32 %v908, %v988
    %990 = vmatpush.xpose.msra.mxu0 %v989
    %v991 = vand.u32 %v905, 4294901760
    %v992 = vsub.f32 %v905, %v991
    %993 = vmatmul.f32.gmra.mxu0 %v992
    %v994 = vpop.f32.mrf.mxu0
    %v995 = vadd.f32 %v969, %v994
    %996 = vdwg.mxu0
    %997 = vmatpush.xpose.msra.mxu0 0.0
    %998 = vmatpush.xpose.msra.mxu0 0.0
    %999 = vmatpush.xpose.msra.mxu0 0.0
    %1000 = vmatpush.xpose.msra.mxu0 0.0
    %1001 = vmatpush.xpose.msra.mxu0 0.0
    %1002 = vmatpush.xpose.msra.mxu0 0.0
    %1003 = vmatpush.xpose.msra.mxu0 0.0
    %1004 = vmatpush.xpose.msra.mxu0 0.0
    %1005 = vmatpush.xpose.msra.mxu0 0.0
    %1006 = vmatpush.xpose.msra.mxu0 0.0
    %1007 = vmatpush.xpose.msra.mxu0 0.0
    %1008 = vmatpush.xpose.msra.mxu0 0.0
    %1009 = vmatpush.xpose.msra.mxu0 0.0
    %1010 = vmatpush.xpose.msra.mxu0 0.0
    %v1011 = vand.u32 %v911, 4294901760
    %1012 = vmatpush.xpose.msra.mxu0 %v1011
    %v1013 = vand.u32 %v908, 4294901760
    %1014 = vmatpush.xpose.msra.mxu0 %v1013
    %v1015 = vand.u32 %v905, 4294901760
    %v1016 = vsub.f32 %v905, %v1015
    %v1017 = vand.u32 %v1016, 4294901760
    %1018 = vmatmul.f32.gmra.mxu0 %v1017
    %v1019 = vpop.f32.mrf.mxu0
    %v1020 = vadd.f32 %v995, %v1019
    %1021 = vdwg.mxu0
    %1022 = vmatpush.xpose.msra.mxu0 0.0
    %1023 = vmatpush.xpose.msra.mxu0 0.0
    %1024 = vmatpush.xpose.msra.mxu0 0.0
    %1025 = vmatpush.xpose.msra.mxu0 0.0
    %1026 = vmatpush.xpose.msra.mxu0 0.0
    %1027 = vmatpush.xpose.msra.mxu0 0.0
    %1028 = vmatpush.xpose.msra.mxu0 0.0
    %1029 = vmatpush.xpose.msra.mxu0 0.0
    %1030 = vmatpush.xpose.msra.mxu0 0.0
    %1031 = vmatpush.xpose.msra.mxu0 0.0
    %1032 = vmatpush.xpose.msra.mxu0 0.0
    %1033 = vmatpush.xpose.msra.mxu0 0.0
    %1034 = vmatpush.xpose.msra.mxu0 0.0
    %1035 = vmatpush.xpose.msra.mxu0 0.0
    %v1036 = vand.u32 %v911, 4294901760
    %v1037 = vsub.f32 %v911, %v1036
    %v1038 = vand.u32 %v1037, 4294901760
    %1039 = vmatpush.xpose.msra.mxu0 %v1038
    %v1040 = vand.u32 %v908, 4294901760
    %v1041 = vsub.f32 %v908, %v1040
    %v1042 = vand.u32 %v1041, 4294901760
    %1043 = vmatpush.xpose.msra.mxu0 %v1042
    %v1044 = vand.u32 %v905, 4294901760
    %1045 = vmatmul.f32.gmra.mxu0 %v1044
    %v1046 = vpop.f32.mrf.mxu0
    %v1047 = vadd.f32 %v1020, %v1046
    %1048 = vdwg.mxu0
    %1049 = vmatpush.xpose.msra.mxu0 0.0
    %1050 = vmatpush.xpose.msra.mxu0 0.0
    %1051 = vmatpush.xpose.msra.mxu0 0.0
    %1052 = vmatpush.xpose.msra.mxu0 0.0
    %1053 = vmatpush.xpose.msra.mxu0 0.0
    %1054 = vmatpush.xpose.msra.mxu0 0.0
    %1055 = vmatpush.xpose.msra.mxu0 0.0
    %1056 = vmatpush.xpose.msra.mxu0 0.0
    %1057 = vmatpush.xpose.msra.mxu0 0.0
    %1058 = vmatpush.xpose.msra.mxu0 0.0
    %1059 = vmatpush.xpose.msra.mxu0 0.0
    %1060 = vmatpush.xpose.msra.mxu0 0.0
    %1061 = vmatpush.xpose.msra.mxu0 0.0
    %1062 = vmatpush.xpose.msra.mxu0 0.0
    %v1063 = vand.u32 %v911, 4294901760
    %1064 = vmatpush.xpose.msra.mxu0 %v1063
    %v1065 = vand.u32 %v908, 4294901760
    %1066 = vmatpush.xpose.msra.mxu0 %v1065
    %v1067 = vand.u32 %v905, 4294901760
    %1068 = vmatmul.f32.gmra.mxu0 %v1067
    %v1069 = vpop.f32.mrf.mxu0
    %v1070 = vadd.f32 %v1047, %v1069
    %1071 = vdwg.mxu0
    %vm1072 = vcmask 130048
    %v1073 = vsel %vm1072, %v1070, -inf
    %1074 = vmax.xlane.f32.xlu0 %v1073
    %v1075 = vpop.xlane.xlu0 %1074
    %v1076 = vsub.f32 %v1070, %v1075
    %v1077 = vmul.f32 %v1076, 1.442695
    %v1078 = vpow.pop %v1077
    %v1079 = vsel %vm1072, %v1078, 0.0
    %1080 = vadd.xlane.f32.xlu0 %v1079
    %v1081 = vpop.xlane.xlu0 %1080
    %v1082 = vrcp.pop %v1081
    %v1083 = vmul.f32 %v1081, %v1082
    %v1084 = vsub.f32 2.0, %v1083
    %v1085 = vmul.f32 %v1082, %v1084
    %v1086 = vmul.f32 %v1078, %v1085
    %v1088 = vsel %vm1072, %v1086, 0
    %1090 = vmatpush.msra.mxu0 0.0
    %1091 = vmatpush.msra.mxu0 0.0
    %1092 = vmatpush.msra.mxu0 0.0
    %1093 = vmatpush.msra.mxu0 0.0
    %1094 = vmatpush.msra.mxu0 0.0
    %1095 = vmatpush.msra.mxu0 0.0
    %1096 = vmatpush.msra.mxu0 0.0
    %1097 = vmatpush.msra.mxu0 0.0
    %1098 = vmatpush.msra.mxu0 0.0
    %1099 = vmatpush.msra.mxu0 0.0
    %1100 = vmatpush.msra.mxu0 0.0
    %1101 = vmatpush.msra.mxu0 0.0
    %1102 = vmatpush.msra.mxu0 0.0
    %1103 = vmatpush.msra.mxu0 0.0
    %v1104 = vand.u32 %v86, 4294901760
    %1105 = vmatpush.msra.mxu0 %v1104
    %v1106 = vand.u32 %v85, 4294901760
    %1107 = vmatpush.msra.mxu0 %v1106
    %v1108 = vand.u32 %v1088, 4294901760
    %v1109 = vsub.f32 %v1088, %v1108
    %v1110 = vand.u32 %v1109, 4294901760
    %v1111 = vsub.f32 %v1109, %v1110
    %v1112 = vand.u32 %v1111, 4294901760
    %1113 = vmatmul.f32.gmra.mxu0 %v1112
    %v1114 = vpop.f32.mrf.mxu0
    %v1115 = vadd.f32 0.0, %v1114
    %1116 = vdwg.mxu0
    %1117 = vmatpush.msra.mxu0 0.0
    %1118 = vmatpush.msra.mxu0 0.0
    %1119 = vmatpush.msra.mxu0 0.0
    %1120 = vmatpush.msra.mxu0 0.0
    %1121 = vmatpush.msra.mxu0 0.0
    %1122 = vmatpush.msra.mxu0 0.0
    %1123 = vmatpush.msra.mxu0 0.0
    %1124 = vmatpush.msra.mxu0 0.0
    %1125 = vmatpush.msra.mxu0 0.0
    %1126 = vmatpush.msra.mxu0 0.0
    %1127 = vmatpush.msra.mxu0 0.0
    %1128 = vmatpush.msra.mxu0 0.0
    %1129 = vmatpush.msra.mxu0 0.0
    %1130 = vmatpush.msra.mxu0 0.0
    %v1131 = vand.u32 %v86, 4294901760
    %v1132 = vsub.f32 %v86, %v1131
    %v1133 = vand.u32 %v1132, 4294901760
    %v1134 = vsub.f32 %v1132, %v1133
    %v1135 = vand.u32 %v1134, 4294901760
    %1136 = vmatpush.msra.mxu0 %v1135
    %v1137 = vand.u32 %v85, 4294901760
    %v1138 = vsub.f32 %v85, %v1137
    %v1139 = vand.u32 %v1138, 4294901760
    %v1140 = vsub.f32 %v1138, %v1139
    %v1141 = vand.u32 %v1140, 4294901760
    %1142 = vmatpush.msra.mxu0 %v1141
    %v1143 = vand.u32 %v1088, 4294901760
    %1144 = vmatmul.f32.gmra.mxu0 %v1143
    %v1145 = vpop.f32.mrf.mxu0
    %v1146 = vadd.f32 %v1115, %v1145
    %1147 = vdwg.mxu0
    %1148 = vmatpush.msra.mxu0 0.0
    %1149 = vmatpush.msra.mxu0 0.0
    %1150 = vmatpush.msra.mxu0 0.0
    %1151 = vmatpush.msra.mxu0 0.0
    %1152 = vmatpush.msra.mxu0 0.0
    %1153 = vmatpush.msra.mxu0 0.0
    %1154 = vmatpush.msra.mxu0 0.0
    %1155 = vmatpush.msra.mxu0 0.0
    %1156 = vmatpush.msra.mxu0 0.0
    %1157 = vmatpush.msra.mxu0 0.0
    %1158 = vmatpush.msra.mxu0 0.0
    %1159 = vmatpush.msra.mxu0 0.0
    %1160 = vmatpush.msra.mxu0 0.0
    %1161 = vmatpush.msra.mxu0 0.0
    %v1162 = vand.u32 %v86, 4294901760
    %v1163 = vsub.f32 %v86, %v1162
    %1164 = vmatpush.msra.mxu0 %v1163
    %v1165 = vand.u32 %v85, 4294901760
    %v1166 = vsub.f32 %v85, %v1165
    %1167 = vmatpush.msra.mxu0 %v1166
    %v1168 = vand.u32 %v1088, 4294901760
    %v1169 = vsub.f32 %v1088, %v1168
    %1170 = vmatmul.f32.gmra.mxu0 %v1169
    %v1171 = vpop.f32.mrf.mxu0
    %v1172 = vadd.f32 %v1146, %v1171
    %1173 = vdwg.mxu0
    %1174 = vmatpush.msra.mxu0 0.0
    %1175 = vmatpush.msra.mxu0 0.0
    %1176 = vmatpush.msra.mxu0 0.0
    %1177 = vmatpush.msra.mxu0 0.0
    %1178 = vmatpush.msra.mxu0 0.0
    %1179 = vmatpush.msra.mxu0 0.0
    %1180 = vmatpush.msra.mxu0 0.0
    %1181 = vmatpush.msra.mxu0 0.0
    %1182 = vmatpush.msra.mxu0 0.0
    %1183 = vmatpush.msra.mxu0 0.0
    %1184 = vmatpush.msra.mxu0 0.0
    %1185 = vmatpush.msra.mxu0 0.0
    %1186 = vmatpush.msra.mxu0 0.0
    %1187 = vmatpush.msra.mxu0 0.0
    %v1188 = vand.u32 %v86, 4294901760
    %1189 = vmatpush.msra.mxu0 %v1188
    %v1190 = vand.u32 %v85, 4294901760
    %1191 = vmatpush.msra.mxu0 %v1190
    %v1192 = vand.u32 %v1088, 4294901760
    %v1193 = vsub.f32 %v1088, %v1192
    %v1194 = vand.u32 %v1193, 4294901760
    %1195 = vmatmul.f32.gmra.mxu0 %v1194
    %v1196 = vpop.f32.mrf.mxu0
    %v1197 = vadd.f32 %v1172, %v1196
    %1198 = vdwg.mxu0
    %1199 = vmatpush.msra.mxu0 0.0
    %1200 = vmatpush.msra.mxu0 0.0
    %1201 = vmatpush.msra.mxu0 0.0
    %1202 = vmatpush.msra.mxu0 0.0
    %1203 = vmatpush.msra.mxu0 0.0
    %1204 = vmatpush.msra.mxu0 0.0
    %1205 = vmatpush.msra.mxu0 0.0
    %1206 = vmatpush.msra.mxu0 0.0
    %1207 = vmatpush.msra.mxu0 0.0
    %1208 = vmatpush.msra.mxu0 0.0
    %1209 = vmatpush.msra.mxu0 0.0
    %1210 = vmatpush.msra.mxu0 0.0
    %1211 = vmatpush.msra.mxu0 0.0
    %1212 = vmatpush.msra.mxu0 0.0
    %v1213 = vand.u32 %v86, 4294901760
    %v1214 = vsub.f32 %v86, %v1213
    %v1215 = vand.u32 %v1214, 4294901760
    %1216 = vmatpush.msra.mxu0 %v1215
    %v1217 = vand.u32 %v85, 4294901760
    %v1218 = vsub.f32 %v85, %v1217
    %v1219 = vand.u32 %v1218, 4294901760
    %1220 = vmatpush.msra.mxu0 %v1219
    %v1221 = vand.u32 %v1088, 4294901760
    %1222 = vmatmul.f32.gmra.mxu0 %v1221
    %v1223 = vpop.f32.mrf.mxu0
    %v1224 = vadd.f32 %v1197, %v1223
    %1225 = vdwg.mxu0
    %1226 = vmatpush.msra.mxu0 0.0
    %1227 = vmatpush.msra.mxu0 0.0
    %1228 = vmatpush.msra.mxu0 0.0
    %1229 = vmatpush.msra.mxu0 0.0
    %1230 = vmatpush.msra.mxu0 0.0
    %1231 = vmatpush.msra.mxu0 0.0
    %1232 = vmatpush.msra.mxu0 0.0
    %1233 = vmatpush.msra.mxu0 0.0
    %1234 = vmatpush.msra.mxu0 0.0
    %1235 = vmatpush.msra.mxu0 0.0
    %1236 = vmatpush.msra.mxu0 0.0
    %1237 = vmatpush.msra.mxu0 0.0
    %1238 = vmatpush.msra.mxu0 0.0
    %1239 = vmatpush.msra.mxu0 0.0
    %v1240 = vand.u32 %v86, 4294901760
    %1241 = vmatpush.msra.mxu0 %v1240
    %v1242 = vand.u32 %v85, 4294901760
    %1243 = vmatpush.msra.mxu0 %v1242
    %v1244 = vand.u32 %v1088, 4294901760
    %1245 = vmatmul.f32.gmra.mxu0 %v1244
    %v1246 = vpop.f32.mrf.mxu0
    %v1247 = vadd.f32 %v1224, %v1246
    %1248 = vdwg.mxu0
    %1249 = vst.msk [vmem:[#allocation11] sm:$0xff] %vm1072, %v1086
    %1250 = vst.msk [vmem:[#allocation10] sm:$0xff] %vm96, %v1247
    %v1252 = vrot.slane %v1247, 2
    %v1254 = vadd.f32 %v1247, %v1252
    %v1255 = vrot.slane %v1247, 4
    %v1257 = vadd.f32 %v1254, %v1255
    %v1258 = vrot.slane %v1247, 6
    %v1260 = vadd.f32 %v1257, %v1258
    %v1261 = vmul.f32 %v1260, 0.25
    %vm1262 = vcmask 254976
    %1263 = vst.msk [vmem:[#allocation13] sm:$0x3] %vm1262, %v1261
    // Predicated region
    $region34: #{shared_swarm_memory_forward.1} parent=1 // pred_check
      _
    $region35: #{shared_swarm_memory_forward.1} parent=1 // pred_check_branch
      %1265 = sbr.rel (0) target = $region37
    $region36: #{shared_swarm_memory_forward.1} parent=1 // pred_region
      %1267 = vsyncadd [#allocation4], 0
      %s1269 = sshll.u32 [#allocation10], 4
      %s1270 = int_to_ptr.vmem [resolvable:$true] %s1269
      %s1271 = sshll.u32 %s4, 4
      %s1272 = int_to_ptr.hbm [resolvable:$true] %s1271
      %1274 = dma.vmem_to_hbm [thread:$0]  %s1270, 128, %s1272, [#allocation4]
    $region37: #{shared_swarm_memory_forward.1} parent=1 // pred_fallthru
      _
    // Predicated region
    $region38: #{shared_swarm_memory_forward.1} parent=1 // pred_check
      _
    $region39: #{shared_swarm_memory_forward.1} parent=1 // pred_check_branch
      %1276 = sbr.rel (0) target = $region41
    $region40: #{shared_swarm_memory_forward.1} parent=1 // pred_region
      %1278 = vsyncadd [#allocation12], 0
      %s1280 = sshll.u32 [#allocation11], 4
      %s1281 = int_to_ptr.vmem [resolvable:$true] %s1280
      %s1282 = sshll.u32 %s5, 4
      %s1283 = int_to_ptr.hbm [resolvable:$true] %s1282
      %1285 = dma.vmem_to_hbm [thread:$0]  %s1281, 128, %s1283, [#allocation12]
    $region41: #{shared_swarm_memory_forward.1} parent=1 // pred_fallthru
      _
    // Predicated region
    $region42: #{shared_swarm_memory_forward.1} parent=1 // pred_check
      _
    $region43: #{shared_swarm_memory_forward.1} parent=1 // pred_check_branch
      %1287 = sbr.rel (0) target = $region45
    $region44: #{shared_swarm_memory_forward.1} parent=1 // pred_region
      %1289 = vsyncadd [#allocation12], 0
      %s1291 = sshll.u32 [#allocation13], 4
      %s1292 = int_to_ptr.vmem [resolvable:$true] %s1291
      %s1293 = sshll.u32 %s6, 4
      %s1294 = int_to_ptr.hbm [resolvable:$true] %s1293
      %1296 = dma.vmem_to_hbm [thread:$0]  %s1292, 32, %s1294, [#allocation12]
    $region45: #{shared_swarm_memory_forward.1} parent=1 // pred_fallthru
      _
    // Predicated region
    $region46: #{shared_swarm_memory_forward.1} parent=1 // pred_check
      _
    $region47: #{shared_swarm_memory_forward.1} parent=1 // pred_check_branch
      %1298 = sbr.rel (0) target = $region49
    $region48: #{shared_swarm_memory_forward.1} parent=1 // pred_region
      %1300 = dma.done [#allocation4], 128
    $region49: #{shared_swarm_memory_forward.1} parent=1 // pred_fallthru
      _
    // Predicated region
    $region50: #{shared_swarm_memory_forward.1} parent=1 // pred_check
      _
    $region51: #{shared_swarm_memory_forward.1} parent=1 // pred_check_branch
      %1302 = sbr.rel (0) target = $region53
    $region52: #{shared_swarm_memory_forward.1} parent=1 // pred_region
      %1304 = dma.done [#allocation12], 128
    $region53: #{shared_swarm_memory_forward.1} parent=1 // pred_fallthru
      _
    // Predicated region
    $region54: #{shared_swarm_memory_forward.1} parent=1 // pred_check
      _
    $region55: #{shared_swarm_memory_forward.1} parent=1 // pred_check_branch
      %1306 = sbr.rel (0) target = $region57
    $region56: #{shared_swarm_memory_forward.1} parent=1 // pred_region
      %1308 = dma.done [#allocation12], 32
    $region57: #{shared_swarm_memory_forward.1} parent=1 // pred_fallthru
      _
    %1309 = vsyncpa [#allocation3], 1
    %1310 = vsyncpa [#allocation6], 1
    %1311 = vsyncpa [#allocation9], 1
    %1312 = vsyncpa [#allocation4], 1
    %1313 = vsyncpa [#allocation12], 1

</llo_original>
